<compile_context>
chip_gen: v6e
topology: v6e:2x2x1
jax: 0.10.0
libtpu: 0.0.40
codegen_flags: <defaults>
</compile_context>

<pallas_src>
import functools

import jax
import jax.numpy as jnp
from jax.experimental import pallas as pl
from jax.experimental.pallas import tpu as pltpu


# ---------------------------------------------------------------------------
# Tuning knobs.  This is a pure HBM-roofline kernel: block sizing is the game.
# ---------------------------------------------------------------------------
_TARGET_BLOCK_BYTES = 2 * 1024 * 1024        # ~1-4 MiB reaches ~85% of HBM BW
_MAX_SINGLE_PASS_BYTES = 4 * 1024 * 1024     # above this: two-pass stats+apply
_VMEM_LIMIT_BYTES = 40 * 1024 * 1024         # explicit scoped VMEM (v7x-safe)


def _round_up(x, m):
    return (x + m - 1) // m * m


def _padded_group_bytes(cg, hw):
    # VMEM footprint of one (Cg, HW) group tile after (8, 128) tiling, f32.
    return _round_up(cg, 8) * _round_up(hw, 128) * 4


def _pick_groups_per_block(batch, groups, group_bytes, target_bytes):
    """Largest Nt (whole groups per block) such that the block stays <= target
    and weight indexing stays trivial: Nt | G, or Nt = k*G with k | B."""
    best = 1
    for d in range(1, groups + 1):
        if groups % d == 0 and d * group_bytes <= target_bytes:
            best = max(best, d)
    for k in range(1, batch + 1):
        if batch % k == 0 and k * groups * group_bytes <= target_bytes:
            best = max(best, k * groups)
    return best


def _pick_hw_chunk(hw, cg, target_bytes):
    """Largest divisor of HW that is a multiple of 128 (lane-dense blocks) and
    keeps the (Cg, chunk) tile <= target; None if no such divisor exists."""
    row_bytes = _round_up(cg, 8) * 4
    candidates = [d for d in range(128, hw + 1, 128) if hw % d == 0]
    if not candidates:
        return None
    fitting = [d for d in candidates if d * row_bytes <= target_bytes]
    return max(fitting) if fitting else min(candidates)


# ---------------------------------------------------------------------------
# Single-pass fused kernel (groups fit comfortably in VMEM).
# ---------------------------------------------------------------------------
def _gn_fused_kernel(x_ref, w_ref, b_ref, o_ref, *, eps, n, nt, lw):
    """x_ref/o_ref block: (Nt, Cg, HW) -- Nt whole groups per grid step.
    w_ref/b_ref block: (Lw, Cg, 1) -- full affine table, DMA'd once
    (constant index_map), sliced by group row inside the kernel."""
    i = pl.program_id(0)
    row0 = pl.multiple_of((i * nt) % lw, nt)      # first affine row of block

    xf = x_ref[...].astype(jnp.float32)           # (Nt, Cg, HW)

    # One reduce pass: per-group sum and sum of squares (elementwise square is
    # fused into the reduction; no full-tile temporaries for the output pass).
    s = jnp.sum(jnp.sum(xf, axis=2, keepdims=True), axis=1, keepdims=True)
    ss = jnp.sum(jnp.sum(xf * xf, axis=2, keepdims=True), axis=1, keepdims=True)

    mean = s * (1.0 / n)                          # (Nt, 1, 1)
    # torch.var default is *unbiased* (divide by N-1), matching the module.
    # NOTE: sum/sumsq form can lose precision when |mean| >> std; fine for
    # activation statistics.  max(n-1,1) guards the degenerate n == 1 case.
    var = (ss - s * mean) * (1.0 / max(n - 1, 1))
    inv_std = jax.lax.rsqrt(var + eps)            # (Nt, 1, 1)

    # Fold the affine into the stats: out = x * scale + shift, single FMA pass.
    w = w_ref[pl.ds(row0, nt)].astype(jnp.float32)    # (Nt, Cg, 1)
    b = b_ref[pl.ds(row0, nt)].astype(jnp.float32)
    scale = inv_std * w                               # (Nt, Cg, 1)
    shift = b - mean * scale                          # (Nt, Cg, 1)

    o_ref[...] = (xf * scale + shift).astype(o_ref.dtype)


# ---------------------------------------------------------------------------
# Two-pass path for very large groups (stats over HW chunks, then normalize).
# ---------------------------------------------------------------------------
def _gn_stats_kernel(x_ref, w_ref, b_ref, scale_ref, shift_ref,
                     sum_ref, ssq_ref, *, eps, n):
    c = pl.program_id(1)

    @pl.when(c == 0)
    def _():
        sum_ref[...] = jnp.zeros_like(sum_ref)
        ssq_ref[...] = jnp.zeros_like(ssq_ref)

    xf = x_ref[0].astype(jnp.float32)             # (Cg, hw_chunk)
    sum_ref[...] += jnp.sum(jnp.sum(xf, axis=1, keepdims=True),
                            axis=0, keepdims=True)
    ssq_ref[...] += jnp.sum(jnp.sum(xf * xf, axis=1, keepdims=True),
                            axis=0, keepdims=True)

    @pl.when(c == pl.num_programs(1) - 1)
    def _():
        s = sum_ref[...]                          # (1, 1)
        mean = s * (1.0 / n)
        var = (ssq_ref[...] - s * mean) * (1.0 / max(n - 1, 1))
        inv_std = jax.lax.rsqrt(var + eps)
        w = w_ref[0].astype(jnp.float32)          # (Cg, 1)
        b = b_ref[0].astype(jnp.float32)
        scale = inv_std * w
        shift = b - mean * scale
        scale_ref[0] = scale
        shift_ref[0] = shift


def _gn_apply_kernel(x_ref, scale_ref, shift_ref, o_ref):
    xf = x_ref[0].astype(jnp.float32)
    o_ref[0] = (xf * scale_ref[0] + shift_ref[0]).astype(o_ref.dtype)


# ---------------------------------------------------------------------------
# Wrapper
# ---------------------------------------------------------------------------
def group_norm_pallas(x, weight, bias, num_groups, eps=1e-6, *,
                      target_block_bytes=_TARGET_BLOCK_BYTES,
                      max_single_pass_bytes=_MAX_SINGLE_PASS_BYTES):
    """x: (B, C, H, W); weight/bias: (1, C, 1, 1). Returns (B, C, H, W)."""
    B, C, H, W = x.shape
    G = num_groups
    if C % G != 0:
        raise ValueError("num_channels must be divisible by num_groups")
    Cg = C // G
    HW = H * W
    BG = B * G
    n = Cg * HW
    itemsize = jnp.dtype(x.dtype).itemsize

    x_r = x.reshape(BG, Cg, HW)
    w_r = jnp.asarray(weight).reshape(G, Cg, 1)
    b_r = jnp.asarray(bias).reshape(G, Cg, 1)

    group_bytes = _padded_group_bytes(Cg, HW)

    hw_chunk = None
    if group_bytes > max_single_pass_bytes:
        hw_chunk = _pick_hw_chunk(HW, Cg, target_block_bytes)

    if hw_chunk is None:
        # ---------------- single-pass fused kernel ----------------
        nt = _pick_groups_per_block(B, G, group_bytes, target_block_bytes)
        if nt > G:
            lw = nt
            w_pass = jnp.tile(w_r, (nt // G, 1, 1))
            b_pass = jnp.tile(b_r, (nt // G, 1, 1))
        else:
            lw = G
            w_pass, b_pass = w_r, b_r

        blk_bytes = nt * group_bytes
        # in (x2 buffers) + out (x2 buffers) + compute temps + affine table.
        vmem_limit = int(max(_VMEM_LIMIT_BYTES, 5 * blk_bytes + 8 * 1024 * 1024))

        kernel = functools.partial(_gn_fused_kernel, eps=eps, n=n, nt=nt, lw=lw)
        cost = pl.CostEstimate(flops=6 * x.size, transcendentals=BG,
                               bytes_accessed=2 * x.size * itemsize
                               + 2 * C * itemsize)

        out = pl.pallas_call(
            kernel,
            out_shape=jax.ShapeDtypeStruct((BG, Cg, HW), x.dtype),
            grid_spec=pltpu.PrefetchScalarGridSpec(
                num_scalar_prefetch=0,
                grid=(BG // nt,),                       # one flat parallel axis
                in_specs=[
                    pl.BlockSpec((nt, Cg, HW), lambda i: (i, 0, 0)),
                    pl.BlockSpec((lw, Cg, 1), lambda i: (0, 0, 0)),
                    pl.BlockSpec((lw, Cg, 1), lambda i: (0, 0, 0)),
                ],
                out_specs=pl.BlockSpec((nt, Cg, HW), lambda i: (i, 0, 0)),
            ),
            compiler_params=pltpu.CompilerParams(
                dimension_semantics=("parallel",),
                vmem_limit_bytes=vmem_limit),
            cost_estimate=cost,
        )(x_r, w_pass, b_pass)
        return out.reshape(B, C, H, W)

    # ---------------- two-pass path (very large groups) ----------------
    n_chunks = HW // hw_chunk

    stats_kernel = functools.partial(_gn_stats_kernel, eps=eps, n=n)
    scale, shift = pl.pallas_call(
        stats_kernel,
        out_shape=(jax.ShapeDtypeStruct((BG, Cg, 1), jnp.float32),
                   jax.ShapeDtypeStruct((BG, Cg, 1), jnp.float32)),
        grid_spec=pltpu.PrefetchScalarGridSpec(
            num_scalar_prefetch=0,
            grid=(BG, n_chunks),                        # reduction axis last
            in_specs=[
                pl.BlockSpec((1, Cg, hw_chunk), lambda bg, c: (bg, 0, c)),
                pl.BlockSpec((1, Cg, 1), lambda bg, c: (bg % G, 0, 0)),
                pl.BlockSpec((1, Cg, 1), lambda bg, c: (bg % G, 0, 0)),
            ],
            out_specs=[pl.BlockSpec((1, Cg, 1), lambda bg, c: (bg, 0, 0)),
                       pl.BlockSpec((1, Cg, 1), lambda bg, c: (bg, 0, 0))],
            scratch_shapes=[pltpu.VMEM((1, 1), jnp.float32),
                            pltpu.VMEM((1, 1), jnp.float32)]),
        compiler_params=pltpu.CompilerParams(
            dimension_semantics=("parallel", "arbitrary"),
            vmem_limit_bytes=_VMEM_LIMIT_BYTES),
        cost_estimate=pl.CostEstimate(flops=3 * x.size, transcendentals=BG,
                                      bytes_accessed=x.size * itemsize),
    )(x_r, w_r, b_r)

    out = pl.pallas_call(
        _gn_apply_kernel,
        out_shape=jax.ShapeDtypeStruct((BG, Cg, HW), x.dtype),
        grid_spec=pltpu.PrefetchScalarGridSpec(
            num_scalar_prefetch=0,
            grid=(BG, n_chunks),
            in_specs=[
                pl.BlockSpec((1, Cg, hw_chunk), lambda bg, c: (bg, 0, c)),
                pl.BlockSpec((1, Cg, 1), lambda bg, c: (bg, 0, 0)),
                pl.BlockSpec((1, Cg, 1), lambda bg, c: (bg, 0, 0)),
            ],
            out_specs=pl.BlockSpec((1, Cg, hw_chunk), lambda bg, c: (bg, 0, c))),
        compiler_params=pltpu.CompilerParams(
            dimension_semantics=("parallel", "parallel"),
            vmem_limit_bytes=_VMEM_LIMIT_BYTES),
        cost_estimate=pl.CostEstimate(flops=2 * x.size, transcendentals=0,
                                      bytes_accessed=2 * x.size * itemsize),
    )(x_r, scale, shift)
    return out.reshape(B, C, H, W)


def group_norm_ref(x, weight, bias, num_groups, eps=1e-6):
    """Plain-JAX reference mirroring the PyTorch forward exactly."""
    B, C, H, W = x.shape
    G = num_groups
    xr = x.reshape(B, G, -1)
    mean = jnp.mean(xr, axis=2, keepdims=True)
    var = jnp.var(xr, axis=2, keepdims=True, ddof=1)  # unbiased, like torch.var
    xn = (xr - mean) / jnp.sqrt(var + eps)
    xn = xn.reshape(B, C, H, W)
    return xn * weight + bias


def _check(out, ref, tag):
    assert out.shape == ref.shape, tag
    err = float(jnp.max(jnp.abs(out - ref)))
    assert jnp.allclose(out, ref, atol=1e-5, rtol=1e-5), (tag, err)


if __name__ == "__main__":
    eps = 1e-6
    key = jax.random.PRNGKey(0)
    kx, kw, kb, kx2, kw2, kb2 = jax.random.split(key, 6)

    # --- test 1: module-sized input, single-pass packed path (Nt = 2*G) ---
    B, C, H, W = 2, 4, 16, 16
    G = 2
    x = jax.random.normal(kx, (B, C, H, W), dtype=jnp.float32)
    weight = jnp.ones((1, C, 1, 1), jnp.float32) + 0.1 * jax.random.normal(
        kw, (1, C, 1, 1), dtype=jnp.float32)
    bias = jnp.zeros((1, C, 1, 1), jnp.float32) + 0.1 * jax.random.normal(
        kb, (1, C, 1, 1), dtype=jnp.float32)

    out = jax.block_until_ready(group_norm_pallas(x, weight, bias, G, eps))
    _check(out, group_norm_ref(x, weight, bias, G, eps), "fused-packed")

    # --- test 2: force Nt < G (per-step group slicing of the affine table) ---
    B2, C2, G2 = 2, 8, 4
    x2 = jax.random.normal(kx2, (B2, C2, H, W), dtype=jnp.float32)
    w2 = jnp.ones((1, C2, 1, 1), jnp.float32) + 0.1 * jax.random.normal(
        kw2, (1, C2, 1, 1), dtype=jnp.float32)
    b2 = jnp.zeros((1, C2, 1, 1), jnp.float32) + 0.1 * jax.random.normal(
        kb2, (1, C2, 1, 1), dtype=jnp.float32)
    small_target = _padded_group_bytes(C2 // G2, H * W)
    out2 = jax.block_until_ready(
        group_norm_pallas(x2, w2, b2, G2, eps, target_block_bytes=small_target))
    _check(out2, group_norm_ref(x2, w2, b2, G2, eps), "fused-single-group")

    # --- test 3: force the two-pass (stats + apply) large-group path ---
    out3 = jax.block_until_ready(
        group_norm_pallas(x, weight, bias, G, eps,
                          max_single_pass_bytes=0, target_block_bytes=4096))
    _check(out3, group_norm_ref(x, weight, bias, G, eps), "two-pass")

    print("KERNEL_OK")
</pallas_src>

<mosaic_0001>
module attributes {stable_mosaic.version = 11 : i64} {
  func.func @_gn_fused_kernel(%arg0: i32, %arg1: memref<4x2x256xf32, #tpu.memory_space<vmem>>, %arg2: memref<4x2x1xf32, #tpu.memory_space<vmem>>, %arg3: memref<4x2x1xf32, #tpu.memory_space<vmem>>, %arg4: memref<4x2x256xf32, #tpu.memory_space<vmem>>) attributes {dimension_semantics = [#tpu.dimension_semantics<parallel>], iteration_bounds = array<i64: 1>, scalar_prefetch = 0 : i64, scratch_operands = 0 : i64, tpu.core_type = #tpu.core_type<tc>, window_params = [{transform_indices = @transform_0, window_bounds = array<i64: 4, 2, 256>}, {pipeline_mode = #tpu.pipeline_mode<synchronous>, transform_indices = @transform_1, window_bounds = array<i64: 4, 2, 1>}, {pipeline_mode = #tpu.pipeline_mode<synchronous>, transform_indices = @transform_2, window_bounds = array<i64: 4, 2, 1>}, {transform_indices = @transform_3, window_bounds = array<i64: 4, 2, 256>}]} {
    %c4_i32 = arith.constant 4 : i32
    %0 = arith.muli %arg0, %c4_i32 : i32
    %c4_i32_0 = arith.constant 4 : i32
    %c0_i32 = arith.constant 0 : i32
    %1 = arith.cmpi eq, %c4_i32_0, %c0_i32 : i32
    %c1_i32 = arith.constant 1 : i32
    %2 = arith.select %1, %c1_i32, %c4_i32_0 : i32
    %3 = arith.remsi %0, %2 : i32
    %c0_i32_1 = arith.constant 0 : i32
    %4 = arith.cmpi ne, %3, %c0_i32_1 : i32
    %c0_i32_2 = arith.constant 0 : i32
    %5 = arith.cmpi slt, %3, %c0_i32_2 : i32
    %c0_i32_3 = arith.constant 0 : i32
    %6 = arith.cmpi slt, %2, %c0_i32_3 : i32
    %7 = arith.xori %5, %6 : i1
    %8 = arith.andi %7, %4 : i1
    %9 = arith.addi %3, %2 : i32
    %10 = arith.select %8, %9, %3 : i32
    %11 = tpu.assume_multiple %10, 4 : i32
    %c0 = arith.constant 0 : index
    %c0_4 = arith.constant 0 : index
    %c0_5 = arith.constant 0 : index
    %12 = vector.load %arg1[%c0, %c0_4, %c0_5] : memref<4x2x256xf32, #tpu.memory_space<vmem>>, vector<4x2x256xf32>
    %cst = arith.constant dense<0.000000e+00> : vector<4x2xf32>
    %13 = vector.multi_reduction <add>, %12, %cst [2] : vector<4x2x256xf32> to vector<4x2xf32>
    %14 = vector.shape_cast %13 : vector<4x2xf32> to vector<4x2x1xf32>
    %cst_6 = arith.constant dense<0.000000e+00> : vector<4x1xf32>
    %15 = vector.multi_reduction <add>, %14, %cst_6 [1] : vector<4x2x1xf32> to vector<4x1xf32>
    %16 = vector.shape_cast %15 : vector<4x1xf32> to vector<4x1x1xf32>
    %17 = arith.mulf %12, %12 : vector<4x2x256xf32>
    %cst_7 = arith.constant dense<0.000000e+00> : vector<4x2xf32>
    %18 = vector.multi_reduction <add>, %17, %cst_7 [2] : vector<4x2x256xf32> to vector<4x2xf32>
    %19 = vector.shape_cast %18 : vector<4x2xf32> to vector<4x2x1xf32>
    %cst_8 = arith.constant dense<0.000000e+00> : vector<4x1xf32>
    %20 = vector.multi_reduction <add>, %19, %cst_8 [1] : vector<4x2x1xf32> to vector<4x1xf32>
    %21 = vector.shape_cast %20 : vector<4x1xf32> to vector<4x1x1xf32>
    %cst_9 = arith.constant 0.001953125 : f32
    %22 = vector.broadcast %cst_9 : f32 to vector<4x1x1xf32>
    %23 = arith.mulf %16, %22 : vector<4x1x1xf32>
    %24 = arith.mulf %16, %23 : vector<4x1x1xf32>
    %25 = arith.subf %21, %24 : vector<4x1x1xf32>
    %cst_10 = arith.constant 0.00195694715 : f32
    %26 = vector.broadcast %cst_10 : f32 to vector<4x1x1xf32>
    %27 = arith.mulf %25, %26 : vector<4x1x1xf32>
    %cst_11 = arith.constant 9.99999997E-7 : f32
    %28 = vector.broadcast %cst_11 : f32 to vector<4x1x1xf32>
    %29 = arith.addf %27, %28 : vector<4x1x1xf32>
    %30 = math.rsqrt %29 : vector<4x1x1xf32>
    %31 = arith.index_cast %11 : i32 to index
    %c0_12 = arith.constant 0 : index
    %c0_13 = arith.constant 0 : index
    %32 = vector.load %arg2[%31, %c0_12, %c0_13] : memref<4x2x1xf32, #tpu.memory_space<vmem>>, vector<4x2x1xf32>
    %33 = arith.index_cast %11 : i32 to index
    %c0_14 = arith.constant 0 : index
    %c0_15 = arith.constant 0 : index
    %34 = vector.load %arg3[%33, %c0_14, %c0_15] : memref<4x2x1xf32, #tpu.memory_space<vmem>>, vector<4x2x1xf32>
    %35 = vector.broadcast %30 : vector<4x1x1xf32> to vector<4x2x1xf32>
    %36 = arith.mulf %35, %32 : vector<4x2x1xf32>
    %37 = vector.broadcast %23 : vector<4x1x1xf32> to vector<4x2x1xf32>
    %38 = arith.mulf %37, %36 : vector<4x2x1xf32>
    %39 = arith.subf %34, %38 : vector<4x2x1xf32>
    %40 = vector.broadcast %36 : vector<4x2x1xf32> to vector<4x2x256xf32>
    %41 = arith.mulf %12, %40 : vector<4x2x256xf32>
    %42 = vector.broadcast %39 : vector<4x2x1xf32> to vector<4x2x256xf32>
    %43 = arith.addf %41, %42 : vector<4x2x256xf32>
    %c0_16 = arith.constant 0 : index
    %c0_17 = arith.constant 0 : index
    %c0_18 = arith.constant 0 : index
    %44 = vector.load %arg4[%c0_16, %c0_17, %c0_18] : memref<4x2x256xf32, #tpu.memory_space<vmem>>, vector<4x2x256xf32>
    tpu.vector_store %arg4[%c0_16, %c0_17, %c0_18], %43 {strides = array<i32>} : memref<4x2x256xf32, #tpu.memory_space<vmem>>, vector<4x2x256xf32>,
    return
  }
  func.func @transform_0(%arg0: i32) -> (i32, i32, i32) {
    %c0_i32 = arith.constant 0 : i32
    %c0_i32_0 = arith.constant 0 : i32
    %c0_i32_1 = arith.constant 0 : i32
    return %arg0, %c0_i32, %c0_i32_0 : i32, i32, i32
  }
  func.func @transform_1(%arg0: i32) -> (i32, i32, i32) {
    %c0_i32 = arith.constant 0 : i32
    %c0_i32_0 = arith.constant 0 : i32
    %c0_i32_1 = arith.constant 0 : i32
    %c0_i32_2 = arith.constant 0 : i32
    return %c0_i32, %c0_i32_0, %c0_i32_1 : i32, i32, i32
  }
  func.func @transform_2(%arg0: i32) -> (i32, i32, i32) {
    %c0_i32 = arith.constant 0 : i32
    %c0_i32_0 = arith.constant 0 : i32
    %c0_i32_1 = arith.constant 0 : i32
    %c0_i32_2 = arith.constant 0 : i32
    return %c0_i32, %c0_i32_0, %c0_i32_1 : i32, i32, i32
  }
  func.func @transform_3(%arg0: i32) -> (i32, i32, i32) {
    %c0_i32 = arith.constant 0 : i32
    %c0_i32_0 = arith.constant 0 : i32
    %c0_i32_1 = arith.constant 0 : i32
    return %arg0, %c0_i32, %c0_i32_0 : i32, i32, i32
  }
}

</mosaic_0001>

<llo_original>
// kernel: tpu_custom_call.1
$region0: #{tpu_custom_call.1}
  #allocation0 [shape = 'u32[]', space=smem, size = 0x4, offset = 0x4, fixed_abs, tag = 'smem constant byte address 0x4 - core index']
  #allocation1 [shape = 'u32[144,128]{1,0:T(1,128)}', space=vmem, size = 0x12000, scoped, tag = 'internal scratch']
  %s0 = inlined_call_operand.vmem [shape: f32[4,2,256], index: 0, kind: input, shape index: {}]
  %s1 = inlined_call_operand.vmem [shape: f32[4,2,1], index: 1, kind: input, shape index: {}]
  %s2 = inlined_call_operand.vmem [shape: f32[4,2,1], index: 2, kind: input, shape index: {}]
  %s3 = inlined_call_operand.hbm [shape: f32[4,2,256], index: 3, kind: output, shape index: {}]
  %s4 = sld [smem:[#allocation0]]
  $region22: #{tpu_custom_call.1} parent=0
    _
  %s6 = ssub.s32 1, %s4
  %s7 = scalar_select 0, %s6, %s4
  $region1: #{tpu_custom_call.1} parent=0
    #allocation2 [shape = 'u8[8192]{0}', space=vmem, size = 0x2000, scoped, tag = 'output window, operand 0, single buffered']
    #allocation3 [shape = 's32[1]{0}', space=sflag, size = 0x4, scoped, tag = 'scoped memory for tpu_custom_call.1']
    %8 = vsyncpa [#allocation3], 0
    // Predicated region
    $region2: #{tpu_custom_call.1} parent=1 // pred_check
      _
    $region3: #{tpu_custom_call.1} parent=1 // pred_check_branch
      %10 = sbr.rel (0) target = $region5
    $region4: #{tpu_custom_call.1} parent=1 // pred_region
      _
    $region5: #{tpu_custom_call.1} parent=1 // pred_fallthru
      _
    // Predicated region
    $region6: #{tpu_custom_call.1} parent=1 // pred_check
      _
    $region7: #{tpu_custom_call.1} parent=1 // pred_check_branch
      %12 = sbr.rel (0) target = $region9
    $region8: #{tpu_custom_call.1} parent=1 // pred_region
      _
    $region9: #{tpu_custom_call.1} parent=1 // pred_fallthru
      _
    // Predicated region
    $region10: #{tpu_custom_call.1} parent=1 // pred_check
      _
    $region11: #{tpu_custom_call.1} parent=1 // pred_check_branch
      %14 = sbr.rel (0) target = $region13
    $region12: #{tpu_custom_call.1} parent=1 // pred_region
      _
    $region13: #{tpu_custom_call.1} parent=1 // pred_fallthru
      _
    %s15 = smul.u32 0, 4
    %p16 = scmp.lt.s32.totalorder %s15, 0
    %s17 = ssub.s32 0, %s15
    %s18 = scalar_select %p16, %s17, %s15
    %s19 = sand.u32 %s18, 3
    %s20 = ssub.s32 0, %s19
    %s21 = scalar_select %p16, %s20, %s19
    %p22 = scmp.ne.s32.totalorder %s21, 0
    %p23 = scmp.lt.s32.totalorder %s21, 0
    %p24 = pnand %p23, %p22
    %p25 = pneg %p24
    %s26 = sadd.s32 %s21, 4
    %s27 = scalar_select %p25, %s26, %s21
    %v28 = vld [vmem:[%s0] sm:$0xf]
    %v29 = vld [vmem:[%s0 + $0x4] sm:$0xf]
    %v30 = vld [vmem:[%s0 + $0x8] sm:$0xf]
    %v31 = vld [vmem:[%s0 + $0xc] sm:$0xf]
    %v37 = vunpack.c.l.s4 1983009808
    %v38 = vunpack.c.0.s8 %v37
    %v39 = vlaneseq
    %v40 = vshrl.u32 %v39, 7
    %v41 = vsub.s32 %v38, %v40
    %v42 = vrot.slane %v28, %v41
    %v43 = vcombine.high %v42, %v42
    %v45 = vunpack.c.l.s4 1983009808
    %v46 = vunpack.c.0.s8 %v45
    %v47 = vlaneseq
    %v48 = vshrl.u32 %v47, 7
    %v49 = vsub.s32 %v46, %v48
    %v50 = vrot.slane %v29, %v49
    %v51 = vcombine.high %v50, %v50
    %v53 = vunpack.c.l.s4 1983009808
    %v54 = vunpack.c.0.s8 %v53
    %v55 = vlaneseq
    %v56 = vshrl.u32 %v55, 7
    %v57 = vsub.s32 %v54, %v56
    %v58 = vrot.slane %v30, %v57
    %v59 = vcombine.high %v58, %v58
    %v61 = vunpack.c.l.s4 1983009808
    %v62 = vunpack.c.0.s8 %v61
    %v63 = vlaneseq
    %v64 = vshrl.u32 %v63, 7
    %v65 = vsub.s32 %v62, %v64
    %v66 = vrot.slane %v31, %v65
    %v67 = vcombine.high %v66, %v66
    %vm76 = vcmask 1041408
    %v77 = vsel %vm76, %v42, 0.0
    %v78 = vsel %vm76, %v43, 0.0
    %v79 = vadd.f32 %v77, %v78
    %80 = vadd.xlane.f32.xlu0 %v79
    %v81 = vpop.xlane.xlu0 %80
    %v82 = vsel %vm76, %v50, 0.0
    %v83 = vsel %vm76, %v51, 0.0
    %v84 = vadd.f32 %v82, %v83
    %85 = vadd.xlane.f32.xlu0 %v84
    %v86 = vpop.xlane.xlu0 %85
    %v87 = vsel %vm76, %v58, 0.0
    %v88 = vsel %vm76, %v59, 0.0
    %v89 = vadd.f32 %v87, %v88
    %90 = vadd.xlane.f32.xlu0 %v89
    %v91 = vpop.xlane.xlu0 %90
    %v92 = vsel %vm76, %v66, 0.0
    %v93 = vsel %vm76, %v67, 0.0
    %v94 = vadd.f32 %v92, %v93
    %95 = vadd.xlane.f32.xlu0 %v94
    %v96 = vpop.xlane.xlu0 %95
    %v97 = vsel %vm76, %v81, 0.0
    %v98 = vrot.slane %v97, 4
    %v99 = vadd.f32 %v97, %v98
    %v100 = vrot.slane %v99, 2
    %v101 = vadd.f32 %v99, %v100
    %v102 = vrot.slane %v101, 1
    %v103 = vadd.f32 %v101, %v102
    %v104 = vsel %vm76, %v86, 0.0
    %v105 = vrot.slane %v104, 4
    %v106 = vadd.f32 %v104, %v105
    %v107 = vrot.slane %v106, 2
    %v108 = vadd.f32 %v106, %v107
    %v109 = vrot.slane %v108, 1
    %v110 = vadd.f32 %v108, %v109
    %v111 = vsel %vm76, %v91, 0.0
    %v112 = vrot.slane %v111, 4
    %v113 = vadd.f32 %v111, %v112
    %v114 = vrot.slane %v113, 2
    %v115 = vadd.f32 %v113, %v114
    %v116 = vrot.slane %v115, 1
    %v117 = vadd.f32 %v115, %v116
    %v118 = vsel %vm76, %v96, 0.0
    %v119 = vrot.slane %v118, 4
    %v120 = vadd.f32 %v118, %v119
    %v121 = vrot.slane %v120, 2
    %v122 = vadd.f32 %v120, %v121
    %v123 = vrot.slane %v122, 1
    %v124 = vadd.f32 %v122, %v123
    %v125 = vmul.f32 %v28, %v28
    %v126 = vmul.f32 %v29, %v29
    %v127 = vmul.f32 %v30, %v30
    %v128 = vmul.f32 %v31, %v31
    %v134 = vunpack.c.l.s4 1983009808
    %v135 = vunpack.c.0.s8 %v134
    %v136 = vlaneseq
    %v137 = vshrl.u32 %v136, 7
    %v138 = vsub.s32 %v135, %v137
    %v139 = vrot.slane %v125, %v138
    %v140 = vcombine.high %v139, %v139
    %v142 = vunpack.c.l.s4 1983009808
    %v143 = vunpack.c.0.s8 %v142
    %v144 = vlaneseq
    %v145 = vshrl.u32 %v144, 7
    %v146 = vsub.s32 %v143, %v145
    %v147 = vrot.slane %v126, %v146
    %v148 = vcombine.high %v147, %v147
    %v150 = vunpack.c.l.s4 1983009808
    %v151 = vunpack.c.0.s8 %v150
    %v152 = vlaneseq
    %v153 = vshrl.u32 %v152, 7
    %v154 = vsub.s32 %v151, %v153
    %v155 = vrot.slane %v127, %v154
    %v156 = vcombine.high %v155, %v155
    %v158 = vunpack.c.l.s4 1983009808
    %v159 = vunpack.c.0.s8 %v158
    %v160 = vlaneseq
    %v161 = vshrl.u32 %v160, 7
    %v162 = vsub.s32 %v159, %v161
    %v163 = vrot.slane %v128, %v162
    %v164 = vcombine.high %v163, %v163
    %v173 = vsel %vm76, %v139, 0.0
    %v174 = vsel %vm76, %v140, 0.0
    %v175 = vadd.f32 %v173, %v174
    %176 = vadd.xlane.f32.xlu0 %v175
    %v177 = vpop.xlane.xlu0 %176
    %v178 = vsel %vm76, %v147, 0.0
    %v179 = vsel %vm76, %v148, 0.0
    %v180 = vadd.f32 %v178, %v179
    %181 = vadd.xlane.f32.xlu0 %v180
    %v182 = vpop.xlane.xlu0 %181
    %v183 = vsel %vm76, %v155, 0.0
    %v184 = vsel %vm76, %v156, 0.0
    %v185 = vadd.f32 %v183, %v184
    %186 = vadd.xlane.f32.xlu0 %v185
    %v187 = vpop.xlane.xlu0 %186
    %v188 = vsel %vm76, %v163, 0.0
    %v189 = vsel %vm76, %v164, 0.0
    %v190 = vadd.f32 %v188, %v189
    %191 = vadd.xlane.f32.xlu0 %v190
    %v192 = vpop.xlane.xlu0 %191
    %v193 = vsel %vm76, %v177, 0.0
    %v194 = vrot.slane %v193, 4
    %v195 = vadd.f32 %v193, %v194
    %v196 = vrot.slane %v195, 2
    %v197 = vadd.f32 %v195, %v196
    %v198 = vrot.slane %v197, 1
    %v199 = vadd.f32 %v197, %v198
    %v200 = vsel %vm76, %v182, 0.0
    %v201 = vrot.slane %v200, 4
    %v202 = vadd.f32 %v200, %v201
    %v203 = vrot.slane %v202, 2
    %v204 = vadd.f32 %v202, %v203
    %v205 = vrot.slane %v204, 1
    %v206 = vadd.f32 %v204, %v205
    %v207 = vsel %vm76, %v187, 0.0
    %v208 = vrot.slane %v207, 4
    %v209 = vadd.f32 %v207, %v208
    %v210 = vrot.slane %v209, 2
    %v211 = vadd.f32 %v209, %v210
    %v212 = vrot.slane %v211, 1
    %v213 = vadd.f32 %v211, %v212
    %v214 = vsel %vm76, %v192, 0.0
    %v215 = vrot.slane %v214, 4
    %v216 = vadd.f32 %v214, %v215
    %v217 = vrot.slane %v216, 2
    %v218 = vadd.f32 %v216, %v217
    %v219 = vrot.slane %v218, 1
    %v220 = vadd.f32 %v218, %v219
    %v221 = vmul.f32 %v103, 0.001953125
    %v222 = vmul.f32 %v110, 0.001953125
    %v223 = vmul.f32 %v117, 0.001953125
    %v224 = vmul.f32 %v124, 0.001953125
    %v225 = vmul.f32 %v103, %v221
    %v226 = vmul.f32 %v110, %v222
    %v227 = vmul.f32 %v117, %v223
    %v228 = vmul.f32 %v124, %v224
    %v229 = vsub.f32 %v199, %v225
    %v230 = vsub.f32 %v206, %v226
    %v231 = vsub.f32 %v213, %v227
    %v232 = vsub.f32 %v220, %v228
    %v233 = vmul.f32 %v229, 0.0019569471
    %v234 = vmul.f32 %v230, 0.0019569471
    %v235 = vmul.f32 %v231, 0.0019569471
    %v236 = vmul.f32 %v232, 0.0019569471
    %v237 = vadd.f32 %v233, 1e-06
    %v238 = vadd.f32 %v234, 1e-06
    %v239 = vadd.f32 %v235, 1e-06
    %v240 = vadd.f32 %v236, 1e-06
    %v241 = vrsqrt.pop %v237
    %v242 = vrsqrt.pop %v238
    %v243 = vrsqrt.pop %v239
    %v244 = vrsqrt.pop %v240
    %s245 = smul.u32 %s27, 2
    %s246 = scalar_lea.vmem %s1, %s245
    %v247 = vld [vmem:[%s246] sm:$0x3]
    %v248 = vld [vmem:[%s246 + $0x2] sm:$0x3]
    %v249 = vld [vmem:[%s246 + $0x4] sm:$0x3]
    %v250 = vld [vmem:[%s246 + $0x6] sm:$0x3]
    %s251 = scalar_lea.vmem %s2, %s245
    %v252 = vld [vmem:[%s251] sm:$0x3]
    %v253 = vld [vmem:[%s251 + $0x2] sm:$0x3]
    %v254 = vld [vmem:[%s251 + $0x4] sm:$0x3]
    %v255 = vld [vmem:[%s251 + $0x6] sm:$0x3]
    %v256 = vmul.f32 %v241, %v247
    %v257 = vmul.f32 %v242, %v248
    %v258 = vmul.f32 %v243, %v249
    %v259 = vmul.f32 %v244, %v250
    %v260 = vmul.f32 %v221, %v256
    %v261 = vmul.f32 %v222, %v257
    %v262 = vmul.f32 %v223, %v258
    %v263 = vmul.f32 %v224, %v259
    %v264 = vsub.f32 %v252, %v260
    %v265 = vsub.f32 %v253, %v261
    %v266 = vsub.f32 %v254, %v262
    %v267 = vsub.f32 %v255, %v263
    %269 = vset.pattern.permute.xlu0 0
    %270 = vperm.xlu0 %269, %v256
    %v271 = vpop.permute.xlu0 %270
    %273 = vset.pattern.permute.xlu0 0
    %274 = vperm.xlu0 %273, %v257
    %v275 = vpop.permute.xlu0 %274
    %277 = vset.pattern.permute.xlu0 0
    %278 = vperm.xlu0 %277, %v258
    %v279 = vpop.permute.xlu0 %278
    %281 = vset.pattern.permute.xlu0 0
    %282 = vperm.xlu0 %281, %v259
    %v283 = vpop.permute.xlu0 %282
    %v285 = vunpack.c.l.s4 269488144
    %v286 = vunpack.c.0.s8 %v285
    %v287 = vlaneseq
    %v288 = vshrl.u32 %v287, 7
    %v289 = vsub.s32 %v286, %v288
    %v290 = vrot.slane %v271, %v289
    %v292 = vunpack.c.l.s4 269488144
    %v293 = vunpack.c.0.s8 %v292
    %v294 = vlaneseq
    %v295 = vshrl.u32 %v294, 7
    %v296 = vsub.s32 %v293, %v295
    %v297 = vrot.slane %v275, %v296
    %v299 = vunpack.c.l.s4 269488144
    %v300 = vunpack.c.0.s8 %v299
    %v301 = vlaneseq
    %v302 = vshrl.u32 %v301, 7
    %v303 = vsub.s32 %v300, %v302
    %v304 = vrot.slane %v279, %v303
    %v306 = vunpack.c.l.s4 269488144
    %v307 = vunpack.c.0.s8 %v306
    %v308 = vlaneseq
    %v309 = vshrl.u32 %v308, 7
    %v310 = vsub.s32 %v307, %v309
    %v311 = vrot.slane %v283, %v310
    %v316 = vmul.f32 %v28, %v290
    %v317 = vmul.f32 %v29, %v297
    %v318 = vmul.f32 %v30, %v304
    %v319 = vmul.f32 %v31, %v311
    %321 = vset.pattern.permute.xlu0 0
    %322 = vperm.xlu0 %321, %v264
    %v323 = vpop.permute.xlu0 %322
    %325 = vset.pattern.permute.xlu0 0
    %326 = vperm.xlu0 %325, %v265
    %v327 = vpop.permute.xlu0 %326
    %329 = vset.pattern.permute.xlu0 0
    %330 = vperm.xlu0 %329, %v266
    %v331 = vpop.permute.xlu0 %330
    %333 = vset.pattern.permute.xlu0 0
    %334 = vperm.xlu0 %333, %v267
    %v335 = vpop.permute.xlu0 %334
    %v337 = vunpack.c.l.s4 269488144
    %v338 = vunpack.c.0.s8 %v337
    %v339 = vlaneseq
    %v340 = vshrl.u32 %v339, 7
    %v341 = vsub.s32 %v338, %v340
    %v342 = vrot.slane %v323, %v341
    %v344 = vunpack.c.l.s4 269488144
    %v345 = vunpack.c.0.s8 %v344
    %v346 = vlaneseq
    %v347 = vshrl.u32 %v346, 7
    %v348 = vsub.s32 %v345, %v347
    %v349 = vrot.slane %v327, %v348
    %v351 = vunpack.c.l.s4 269488144
    %v352 = vunpack.c.0.s8 %v351
    %v353 = vlaneseq
    %v354 = vshrl.u32 %v353, 7
    %v355 = vsub.s32 %v352, %v354
    %v356 = vrot.slane %v331, %v355
    %v358 = vunpack.c.l.s4 269488144
    %v359 = vunpack.c.0.s8 %v358
    %v360 = vlaneseq
    %v361 = vshrl.u32 %v360, 7
    %v362 = vsub.s32 %v359, %v361
    %v363 = vrot.slane %v335, %v362
    %v368 = vadd.f32 %v316, %v342
    %v369 = vadd.f32 %v317, %v349
    %v370 = vadd.f32 %v318, %v356
    %v371 = vadd.f32 %v319, %v363
    %372 = vst [vmem:[#allocation2] sm:$0xf] %v368
    %373 = vst [vmem:[#allocation2 + $0x4] sm:$0xf] %v369
    %374 = vst [vmem:[#allocation2 + $0x8] sm:$0xf] %v370
    %375 = vst [vmem:[#allocation2 + $0xc] sm:$0xf] %v371
    // Predicated region
    $region14: #{tpu_custom_call.1} parent=1 // pred_check
      _
    $region15: #{tpu_custom_call.1} parent=1 // pred_check_branch
      %377 = sbr.rel (0) target = $region17
    $region16: #{tpu_custom_call.1} parent=1 // pred_region
      %s379 = ssub.s32 256, 256
      %380 = vsyncadd [#allocation3], %s379
      %s381 = sshll.u32 [#allocation2], 4
      %s382 = int_to_ptr.vmem [resolvable:$true] %s381
      %387 = dma.vmem_to_hbm [thread:$0]  %s382, 256, %s3, [#allocation3], 64, 64, 4
    $region17: #{tpu_custom_call.1} parent=1 // pred_fallthru
      _
    // Predicated region
    $region18: #{tpu_custom_call.1} parent=1 // pred_check
      _
    $region19: #{tpu_custom_call.1} parent=1 // pred_check_branch
      %389 = sbr.rel (0) target = $region21
    $region20: #{tpu_custom_call.1} parent=1 // pred_region
      %390 = dma.done [#allocation3], 256
    $region21: #{tpu_custom_call.1} parent=1 // pred_fallthru
      _
    %391 = vsyncpa [#allocation3], 1

</llo_original>
